<compile_context>
chip_gen: v7x
topology: tpu7x:2x2x1
jax: 0.10.0
libtpu: 0.0.40
codegen_flags: <defaults>
</compile_context>

<pallas_src>
from types import SimpleNamespace

import jax
import jax.numpy as jnp
from jax.experimental import pallas as pl
from jax.experimental.pallas import tpu as pltpu

NUM_GROUPS = 32
_EPS_GN = 1e-5


def _pick_tile(n, cands):
    for c in cands:
        if n % c == 0:
            return c
    return n


# ----------------------------------------------------------------------------
# Kernel 1: fused GroupNorm (pre) + patchified k4/s4 conv GEMM + bias + ReLU
# ----------------------------------------------------------------------------
def _make_down_kernel(G, use_fac):
    def kernel(*refs):
        it = iter(refs)
        x_ref = next(it)
        g_ref = next(it)
        b_ref = next(it)
        p1_ref = p2_ref = None
        if use_fac:
            p1_ref = next(it)
            p2_ref = next(it)
        w_ref = next(it)
        bias_ref = next(it)
        o_ref = next(it)

        x = x_ref[0].astype(jnp.float32)                 # (P, K)
        if G == 1:
            m = jnp.mean(x)
            xc = x - m
            v = jnp.mean(xc * xc)
            xn = xc * jax.lax.rsqrt(v + _EPS_GN)
        else:
            cm = jnp.mean(x, axis=0, keepdims=True)      # per-column mean (1, K)
            gm = jnp.dot(jnp.dot(cm, p1_ref[...], preferred_element_type=jnp.float32),
                         p2_ref[...], preferred_element_type=jnp.float32)
            xc = x - gm                                  # two-pass (stable) variance
            cv = jnp.mean(xc * xc, axis=0, keepdims=True)
            gv = jnp.dot(jnp.dot(cv, p1_ref[...], preferred_element_type=jnp.float32),
                         p2_ref[...], preferred_element_type=jnp.float32)
            xn = xc * jax.lax.rsqrt(gv + _EPS_GN)
        xn = xn * g_ref[...] + b_ref[...]
        y = jnp.dot(xn.astype(jnp.bfloat16), w_ref[...],
                    preferred_element_type=jnp.float32)
        o_ref[0] = jnp.maximum(y + bias_ref[...], 0.0).astype(o_ref.dtype)

    return kernel


def down_conv_gn(x, gamma, beta, w, b, num_groups):
    """GroupNorm(in) -> Conv(k=4, s=4, p=0) -> ReLU, fused in one kernel.
    x: (N,H,W,Cin), w: (4,4,Cin,Cout)."""
    N, H, W, Cin = x.shape
    kh, kw, _, Cout = w.shape
    Ho, Wo = H // kh, W // kw
    P, K = Ho * Wo, kh * kw * Cin
    # TODO(synk): patchify is one extra HBM permutation pass; fold into the kernel.
    cols = x.reshape(N, Ho, kh, Wo, kw, Cin).transpose(0, 1, 3, 2, 4, 5)
    cols = cols.reshape(N, P, K).astype(jnp.bfloat16)

    G = min(num_groups, Cin)
    use_fac = G > 1
    operands = [cols,
                jnp.tile(gamma, kh * kw).reshape(1, K).astype(jnp.float32),
                jnp.tile(beta, kh * kw).reshape(1, K).astype(jnp.float32)]
    in_specs = [pl.BlockSpec((1, P, K), lambda n: (n, 0, 0)),
                pl.BlockSpec((1, K), lambda n: (0, 0)),
                pl.BlockSpec((1, K), lambda n: (0, 0))]
    if use_fac:
        Cg = Cin // G
        grp = (jnp.arange(K) % Cin) // Cg
        gid = jnp.arange(G)
        fm1 = (grp[:, None] == gid[None, :]).astype(jnp.float32) / (kh * kw * Cg)
        fm2 = (gid[:, None] == grp[None, :]).astype(jnp.float32)
        operands += [fm1, fm2]
        in_specs += [pl.BlockSpec((K, G), lambda n: (0, 0)),
                     pl.BlockSpec((G, K), lambda n: (0, 0))]
    operands += [w.reshape(K, Cout).astype(jnp.bfloat16),
                 b.reshape(1, Cout).astype(jnp.float32)]
    in_specs += [pl.BlockSpec((K, Cout), lambda n: (0, 0)),
                 pl.BlockSpec((1, Cout), lambda n: (0, 0))]

    out = pl.pallas_call(
        _make_down_kernel(G, use_fac),
        out_shape=jax.ShapeDtypeStruct((N, P, Cout), jnp.bfloat16),
        grid=(N,),
        in_specs=in_specs,
        out_specs=pl.BlockSpec((1, P, Cout), lambda n: (n, 0, 0)),
        compiler_params=pltpu.CompilerParams(dimension_semantics=("parallel",)),
    )(*operands)
    return out.reshape(N, Ho, Wo, Cout)


# ----------------------------------------------------------------------------
# Kernel 2: per-sample fused stride-1 conv.  kh*kw full-plane tap GEMMs
#           (M = Ho*Wo, f32 accumulator) with optional GN-pre / GN-post /
#           residual / ReLU epilogues.  1x1 convs bypass the padded buffer.
# ----------------------------------------------------------------------------
def _make_conv_kernel(H, W, Cin, Cout, kh, kw, dil, pad, Ho, Wo,
                      gn_pre, G_pre, fac_pre, gn_post, G_post, fac_post,
                      relu, residual, needs_pbuf):
    Hp, Wp = H + 2 * pad, W + 2 * pad

    def _gn2d(v, g_ref, b_ref, p1_ref, p2_ref, G):
        # two-pass GroupNorm on a (rows, C) value; stats over the rows.
        if G == 1:
            m = jnp.mean(v)
            vc = v - m
            var = jnp.mean(vc * vc)
            vn = vc * jax.lax.rsqrt(var + _EPS_GN)
        else:
            cm = jnp.mean(v, axis=0, keepdims=True)                   # (1, C)
            if p1_ref is not None:
                cm = jnp.dot(jnp.dot(cm, p1_ref[...], preferred_element_type=jnp.float32),
                             p2_ref[...], preferred_element_type=jnp.float32)
            vc = v - cm
            cv = jnp.mean(vc * vc, axis=0, keepdims=True)
            if p1_ref is not None:
                cv = jnp.dot(jnp.dot(cv, p1_ref[...], preferred_element_type=jnp.float32),
                             p2_ref[...], preferred_element_type=jnp.float32)
            vn = vc * jax.lax.rsqrt(cv + _EPS_GN)
        return vn * g_ref[...] + b_ref[...]

    def kernel(*refs):
        it = iter(refs)
        x_ref = next(it)
        gpre = bpre = p1pre = p2pre = None
        if gn_pre:
            gpre, bpre = next(it), next(it)
            if fac_pre:
                p1pre, p2pre = next(it), next(it)
        w_ref = next(it)
        bias_ref = next(it)
        gpost = bpost = p1post = p2post = None
        if gn_post:
            gpost, bpost = next(it), next(it)
            if fac_post:
                p1post, p2post = next(it), next(it)
        res_ref = next(it) if residual else None
        o_ref = next(it)
        pbuf = next(it) if needs_pbuf else None

        x = x_ref[0].astype(jnp.float32)                              # (H*W, Cin)
        xn = _gn2d(x, gpre, bpre, p1pre, p2pre, G_pre) if gn_pre else x

        if needs_pbuf:
            # stage the normalized sample in VMEM; zero only the pad frame.
            if pad > 0:
                pbuf[0:pad, :, :] = jnp.zeros((pad, Wp, Cin), jnp.float32)
                pbuf[pad + H:Hp, :, :] = jnp.zeros((pad, Wp, Cin), jnp.float32)
                pbuf[pad:pad + H, 0:pad, :] = jnp.zeros((H, pad, Cin), jnp.float32)
                pbuf[pad:pad + H, pad + W:Wp, :] = jnp.zeros((H, pad, Cin), jnp.float32)
            pbuf[pad:pad + H, pad:pad + W, :] = xn.reshape(H, W, Cin)

            # one full-plane GEMM per tap (small static unroll, kh*kw <= 9)
            acc = jnp.zeros((Ho * Wo, Cout), jnp.float32)
            for i in range(kh):
                for j in range(kw):
                    win = pbuf[i * dil:i * dil + Ho, j * dil:j * dil + Wo, :]
                    acc = acc + jnp.dot(win.reshape(Ho * Wo, Cin).astype(jnp.bfloat16),
                                        w_ref[i * kw + j],
                                        preferred_element_type=jnp.float32)
        else:   # 1x1 conv, pad 0: single GEMM, no staging buffer
            acc = jnp.dot(xn.astype(jnp.bfloat16), w_ref[0],
                          preferred_element_type=jnp.float32)

        y = acc + bias_ref[...]
        if gn_post:
            y = _gn2d(y, gpost, bpost, p1post, p2post, G_post)
        if residual:
            y = y + res_ref[0].astype(jnp.float32)
        if relu:
            y = jnp.maximum(y, 0.0)
        o_ref[0] = y.astype(o_ref.dtype)

    return kernel


def conv2d_fused(x, w, b, *, dil=1, pad=0, gn_pre=None, gn_post=None,
                 relu=False, residual=None, out_dtype=jnp.bfloat16):
    """[GN(pre)] -> conv(kh,kw, stride=1, dil, pad) -> bias [-> GN(post)]
    [-> +residual] [-> ReLU], all fused; x: (N,H,W,Cin), w: (kh,kw,Cin,Cout).
    gn_pre/gn_post = (gamma, beta, num_groups)."""
    N, H, W, Cin = x.shape
    kh, kw, _, Cout = w.shape
    Hp, Wp = H + 2 * pad, W + 2 * pad
    Ho = Hp - dil * (kh - 1)
    Wo = Wp - dil * (kw - 1)
    Pout = Ho * Wo
    needs_pbuf = not (kh == 1 and kw == 1 and pad == 0)

    operands = [x.reshape(N, H * W, Cin).astype(jnp.bfloat16)]
    in_specs = [pl.BlockSpec((1, H * W, Cin), lambda n: (n, 0, 0))]
    vmem_est = 2 * H * W * Cin * 2

    def _append_gn(gn, C):
        g, bt, ng = gn
        G = min(ng, C)
        Cg = C // G
        operands.append(g.reshape(1, C).astype(jnp.float32))
        operands.append(bt.reshape(1, C).astype(jnp.float32))
        in_specs.append(pl.BlockSpec((1, C), lambda n: (0, 0)))
        in_specs.append(pl.BlockSpec((1, C), lambda n: (0, 0)))
        use_fac = (G > 1) and (Cg > 1)
        if use_fac:   # small factor matrices; skipped when groups==channels
            grp = jnp.arange(C) // Cg
            gid = jnp.arange(G)
            fm1 = (grp[:, None] == gid[None, :]).astype(jnp.float32) / Cg
            fm2 = (gid[:, None] == grp[None, :]).astype(jnp.float32)
            operands.append(fm1)
            operands.append(fm2)
            in_specs.append(pl.BlockSpec((C, G), lambda n: (0, 0)))
            in_specs.append(pl.BlockSpec((G, C), lambda n: (0, 0)))
        return G, use_fac

    G_pre, fac_pre = _append_gn(gn_pre, Cin) if gn_pre is not None else (1, False)
    operands.append(w.reshape(kh * kw, Cin, Cout).astype(jnp.bfloat16))
    in_specs.append(pl.BlockSpec((kh * kw, Cin, Cout), lambda n: (0, 0, 0)))
    operands.append(b.reshape(1, Cout).astype(jnp.float32))
    in_specs.append(pl.BlockSpec((1, Cout), lambda n: (0, 0)))
    G_post, fac_post = _append_gn(gn_post, Cout) if gn_post is not None else (1, False)
    if residual is not None:
        operands.append(residual.reshape(N, Pout, Cout).astype(jnp.bfloat16))
        in_specs.append(pl.BlockSpec((1, Pout, Cout), lambda n: (n, 0, 0)))
        vmem_est += 2 * Pout * Cout * 2

    out_isize = 4 if out_dtype == jnp.float32 else 2
    vmem_est += (Hp * Wp * Cin * 4 if needs_pbuf else 0)
    vmem_est += 2 * Pout * Cout * out_isize + 2 * kh * kw * Cin * Cout * 2
    vmem_limit = int(min(max(2 * vmem_est + (8 << 20), 32 << 20), 100 << 20))

    kernel = _make_conv_kernel(H, W, Cin, Cout, kh, kw, dil, pad, Ho, Wo,
                               gn_pre is not None, G_pre, fac_pre,
                               gn_post is not None, G_post, fac_post,
                               relu, residual is not None, needs_pbuf)
    scratch = [pltpu.VMEM((Hp, Wp, Cin), jnp.float32)] if needs_pbuf else []
    # TODO(synk): spatial row-tiling (halo = dil*(kh-1)) for large feature maps
    # and a >=2-step parallel grid axis for v7x megacore.
    out = pl.pallas_call(
        kernel,
        out_shape=jax.ShapeDtypeStruct((N, Pout, Cout), out_dtype),
        grid=(N,),
        in_specs=in_specs,
        out_specs=pl.BlockSpec((1, Pout, Cout), lambda n: (n, 0, 0)),
        scratch_shapes=scratch,
        compiler_params=pltpu.CompilerParams(
            dimension_semantics=("parallel",), vmem_limit_bytes=vmem_limit),
    )(*operands)
    return out.reshape(N, Ho, Wo, Cout)


# ----------------------------------------------------------------------------
# Kernel 3: bf16 GEMM with M/N tiling (used by the bilinear-resize GEMMs)
# ----------------------------------------------------------------------------
def _mm_kernel(a_ref, b_ref, o_ref):
    o_ref[...] = jnp.dot(a_ref[...], b_ref[...],
                         preferred_element_type=jnp.float32).astype(o_ref.dtype)


def pallas_matmul(a, b, out_dtype=jnp.float32):
    M, K = a.shape
    _, N = b.shape
    TM = _pick_tile(M, (1024, 512, 256, 128))
    TN = _pick_tile(N, (2048, 1024, 512, 256, 128))
    return pl.pallas_call(
        _mm_kernel,
        out_shape=jax.ShapeDtypeStruct((M, N), out_dtype),
        grid=(M // TM, N // TN),
        in_specs=[pl.BlockSpec((TM, K), lambda i, j: (i, 0)),
                  pl.BlockSpec((K, TN), lambda i, j: (0, j))],
        out_specs=pl.BlockSpec((TM, TN), lambda i, j: (i, j)),
        compiler_params=pltpu.CompilerParams(
            dimension_semantics=("parallel", "parallel")),
    )(a.astype(jnp.bfloat16), b.astype(jnp.bfloat16))


def _lin_interp_matrix(n_in, n_out, align_corners):
    if n_in == 1:
        return jnp.ones((n_out, 1), jnp.float32)
    if align_corners:
        pos = jnp.arange(n_out, dtype=jnp.float32) * (n_in - 1) / (n_out - 1)
    else:
        pos = (jnp.arange(n_out, dtype=jnp.float32) + 0.5) * n_in / n_out - 0.5
        pos = jnp.clip(pos, 0.0, n_in - 1.0)
    lo = jnp.floor(pos).astype(jnp.int32)
    hi = jnp.minimum(lo + 1, n_in - 1)
    frac = pos - lo.astype(jnp.float32)
    M = jnp.zeros((n_out, n_in), jnp.float32)
    M = M.at[jnp.arange(n_out), lo].add(1.0 - frac)
    M = M.at[jnp.arange(n_out), hi].add(frac)
    return M


def bilinear_resize(x, out_hw, align_corners):
    """Bilinear NHWC resize via two batched GEMMs (matches torch)."""
    N, H, W, C = x.shape
    Ho, Wo = out_hw
    dt = x.dtype
    if H == 1 and W == 1:
        return jnp.broadcast_to(x, (N, Ho, Wo, C))
    Mh = _lin_interp_matrix(H, Ho, align_corners)                 # (Ho, H)
    Mw = _lin_interp_matrix(W, Wo, align_corners)                 # (Wo, W)
    # TODO(synk): fold these HBM transposes into BlockSpec index_maps.
    xr = jnp.transpose(x, (1, 0, 2, 3)).reshape(H, N * W * C)
    t = pallas_matmul(Mh, xr)                                     # (Ho, N*W*C)
    t = t.reshape(Ho, N, W, C).transpose(2, 1, 0, 3).reshape(W, N * Ho * C)
    y = pallas_matmul(Mw, t)                                      # (Wo, N*Ho*C)
    return y.reshape(Wo, N, Ho, C).transpose(1, 2, 0, 3).astype(dt)


# ----------------------------------------------------------------------------
# Kernel 4: softmax / CE / Dice statistics, tiled over pixels.
#           Labels stay int32; the one-hot is built in-kernel (no 128-padding).
# ----------------------------------------------------------------------------
def _seg_stats_kernel(z_ref, y_ref, ce_ref, tp_ref, fp_ref, fn_ref):
    @pl.when(pl.program_id(0) == 0)
    def _():
        ce_ref[...] = jnp.zeros_like(ce_ref)
        tp_ref[...] = jnp.zeros_like(tp_ref)
        fp_ref[...] = jnp.zeros_like(fp_ref)
        fn_ref[...] = jnp.zeros_like(fn_ref)

    z = z_ref[...].astype(jnp.float32)                  # (TP, K) logits
    lbl = y_ref[...]                                    # (TP, 1) int32
    cls = jax.lax.broadcasted_iota(jnp.int32, z.shape, 1)
    y = (cls == lbl).astype(jnp.float32)                # one-hot built in-kernel
    m = jnp.max(z, axis=1, keepdims=True)
    e = jnp.exp(z - m)
    s = jnp.sum(e, axis=1, keepdims=True)
    logp = (z - m) - jnp.log(s)
    p = e / s
    ce_ref[...] += jnp.sum(-y * logp, keepdims=True)
    tp_ref[...] += jnp.sum(p * y, axis=0, keepdims=True)
    fp_ref[...] += jnp.sum(p * (1.0 - y), axis=0, keepdims=True)
    fn_ref[...] += jnp.sum((1.0 - p) * y, axis=0, keepdims=True)


def seg_loss(label, pred_nhwc):
    """DC_and_CE_loss({'batch_dice': True, 'smooth': 1e-5, 'do_bg': False})."""
    N, H, W, K = pred_nhwc.shape
    P = N * H * W
    logits = pred_nhwc.reshape(P, K).astype(jnp.float32)
    labels = label.reshape(P, 1).astype(jnp.int32)
    TP = _pick_tile(P, (2048, 1024, 512, 256, 128, 64, 32, 16, 8))
    ce_sum, tp, fp, fn = pl.pallas_call(
        _seg_stats_kernel,
        out_shape=(jax.ShapeDtypeStruct((1, 1), jnp.float32),
                   jax.ShapeDtypeStruct((1, K), jnp.float32),
                   jax.ShapeDtypeStruct((1, K), jnp.float32),
                   jax.ShapeDtypeStruct((1, K), jnp.float32)),
        grid=(P // TP,),
        in_specs=[pl.BlockSpec((TP, K), lambda i: (i, 0)),
                  pl.BlockSpec((TP, 1), lambda i: (i, 0))],
        out_specs=(pl.BlockSpec((1, 1), lambda i: (0, 0)),
                   pl.BlockSpec((1, K), lambda i: (0, 0)),
                   pl.BlockSpec((1, K), lambda i: (0, 0)),
                   pl.BlockSpec((1, K), lambda i: (0, 0))),
        compiler_params=pltpu.CompilerParams(dimension_semantics=("arbitrary",)),
    )(logits, labels)
    ce = ce_sum[0, 0] / P
    smooth = 1e-5
    dice = (2.0 * tp + smooth) / (2.0 * tp + fp + fn + smooth)   # batch_dice=True
    return ce - jnp.mean(dice[0, 1:])                            # do_bg=False


# ----------------------------------------------------------------------------
# Kernel 5: cosine-embedding regularization, tiled over H*W with per-channel
#           resident accumulators.
# ----------------------------------------------------------------------------
def _cos_kernel(p_ref, t_ref, o_ref, dot_acc, pn_acc, tn_acc):
    @pl.when(pl.program_id(0) == 0)
    def _():
        dot_acc[...] = jnp.zeros_like(dot_acc)
        pn_acc[...] = jnp.zeros_like(pn_acc)
        tn_acc[...] = jnp.zeros_like(tn_acc)

    p = p_ref[...].astype(jnp.float32)                  # (TP, C)
    t = t_ref[...].astype(jnp.float32)
    dot_acc[...] += jnp.sum(p * t, axis=0, keepdims=True)
    pn_acc[...] += jnp.sum(p * p, axis=0, keepdims=True)
    tn_acc[...] += jnp.sum(t * t, axis=0, keepdims=True)

    @pl.when(pl.program_id(0) == pl.num_programs(0) - 1)
    def _():
        pn = jnp.maximum(jnp.sqrt(pn_acc[...]), 1e-8)
        tn = jnp.maximum(jnp.sqrt(tn_acc[...]), 1e-8)
        cos = dot_acc[...] / (pn * tn)
        o_ref[...] = jnp.mean(1.0 - cos, keepdims=True)


def cos_regularization(pred_nhwc, tar_nhwc):
    """nn.CosineEmbeddingLoss(target=1) over pred.flatten(2).squeeze() (N==1)."""
    N, H, W, C = pred_nhwc.shape
    HW = N * H * W
    p = pred_nhwc.reshape(HW, C)
    t = tar_nhwc.reshape(HW, C)
    TP = _pick_tile(HW, (2048, 1024, 512, 256, 128, 64, 32, 16, 8))
    out = pl.pallas_call(
        _cos_kernel,
        out_shape=jax.ShapeDtypeStruct((1, 1), jnp.float32),
        grid=(HW // TP,),
        in_specs=[pl.BlockSpec((TP, C), lambda i: (i, 0)),
                  pl.BlockSpec((TP, C), lambda i: (i, 0))],
        out_specs=pl.BlockSpec((1, 1), lambda i: (0, 0)),
        scratch_shapes=[pltpu.VMEM((1, C), jnp.float32)] * 3,
        compiler_params=pltpu.CompilerParams(dimension_semantics=("arbitrary",)),
    )(p, t)
    return out[0, 0]


# ----------------------------------------------------------------------------
# Encoder / decoder / forward
# ----------------------------------------------------------------------------
def forward_encoder(params, cfg, x, mask_ratio, p):
    # TODO(synk): random_masking path (mask_ratio>0: rand/argsort/gather) not
    # implemented; the default forward uses mask_ratio=0.
    assert mask_ratio == 0
    for stage in params["enc"]:
        # SingleConv 'gcr': GroupNorm(in) -> conv k4 s4 p0 -> ReLU   (fused)
        x = down_conv_gn(x, stage["gn_in"]["g"], stage["gn_in"]["b"],
                         stage["down"]["w"], stage["down"]["b"], NUM_GROUPS)
        r = stage["res"]
        # ExtResNetBlock: (GN->conv->ReLU) x2, (GN->conv), +residual, ReLU
        h = conv2d_fused(x, r[0]["conv"]["w"], r[0]["conv"]["b"], dil=1, pad=1,
                         gn_pre=(r[0]["gn"]["g"], r[0]["gn"]["b"], NUM_GROUPS),
                         relu=True)
        residual = h
        h = conv2d_fused(h, r[1]["conv"]["w"], r[1]["conv"]["b"], dil=1, pad=1,
                         gn_pre=(r[1]["gn"]["g"], r[1]["gn"]["b"], NUM_GROUPS),
                         relu=True)
        x = conv2d_fused(h, r[2]["conv"]["w"], r[2]["conv"]["b"], dil=1, pad=1,
                         gn_pre=(r[2]["gn"]["g"], r[2]["gn"]["b"], NUM_GROUPS),
                         relu=True, residual=residual)
    return x


def seg_decoder(params, cfg, z):
    """DeepLabHead(in=2C, aspp_channel=C, num_classes, ratio=4). z: (N,h,w,2C)."""
    # TODO(synk): exact custom DeepLabHead source unavailable; standard ASPP
    # (1x1 + dilated 3x3 r=6/12/18 + image pooling) -> project -> 3x3 ->
    # 1x1 classifier -> x4 bilinear upsample, GroupNorm instead of BN.
    N, h, w, _ = z.shape
    branches = []
    a0 = params["aspp"][0]
    branches.append(conv2d_fused(z, a0["conv"]["w"], a0["conv"]["b"],
                                 gn_post=(a0["gn"]["g"], a0["gn"]["b"], NUM_GROUPS),
                                 relu=True))
    for k, dil in enumerate((6, 12, 18)):
        a = params["aspp"][1 + k]
        branches.append(conv2d_fused(z, a["conv"]["w"], a["conv"]["b"],
                                     dil=dil, pad=dil,
                                     gn_post=(a["gn"]["g"], a["gn"]["b"], NUM_GROUPS),
                                     relu=True))
    ap = params["aspp"][4]
    gp = jnp.mean(z.astype(jnp.float32), axis=(1, 2), keepdims=True)  # global pooling
    y = conv2d_fused(gp, ap["conv"]["w"], ap["conv"]["b"],
                     gn_post=(ap["gn"]["g"], ap["gn"]["b"], NUM_GROUPS), relu=True)
    branches.append(bilinear_resize(y, (h, w), align_corners=False))

    cat = jnp.concatenate(branches, axis=-1)               # (N, h, w, 5C)
    pr = params["proj"]
    y = conv2d_fused(cat, pr["conv"]["w"], pr["conv"]["b"],
                     gn_post=(pr["gn"]["g"], pr["gn"]["b"], NUM_GROUPS), relu=True)
    hd = params["head"]
    y = conv2d_fused(y, hd["conv"]["w"], hd["conv"]["b"], dil=1, pad=1,
                     gn_post=(hd["gn"]["g"], hd["gn"]["b"], NUM_GROUPS), relu=True)
    logits = conv2d_fused(y, params["cls"]["w"], params["cls"]["b"],
                          out_dtype=jnp.float32)
    ratio = 4
    return bilinear_resize(logits, (h * ratio, w * ratio), align_corners=False)


def masked_seg_forward(params, cfg, coordinates, local_patch, local_label,
                       global_img, global_label, mask_ratio=0,
                       pseudo=False, real_label=True):
    """Default branch of Masked_seg.forward (mask_ratio=0, not pseudo, real label).
    coordinates: tuple of 4 python ints indexing the global latent."""
    # TODO(synk): pseudo / real_label=False / mask_ratio>0 branches not implemented.
    assert (not pseudo) and real_label and mask_ratio == 0
    c0, c1, c2, c3 = coordinates

    local_latent_1 = forward_encoder(params, cfg, local_patch, 0, cfg.train.local_mae_patch)
    global_latent_1 = forward_encoder(params, cfg, global_img, 0, cfg.train.global_mae_patch)

    zoom = global_latent_1[:, c0:c1, c2:c3, :]
    gh, gw = global_latent_1.shape[1:3]
    zoom = bilinear_resize(zoom, (gh, gw), align_corners=True)   # nn.Upsample(align_corners=True)

    pred_1 = seg_decoder(params, cfg, jnp.concatenate([local_latent_1, zoom], axis=-1))
    loss_1 = seg_loss(local_label, pred_1)

    pred_aux_1 = seg_decoder(params, cfg,
                             jnp.concatenate([global_latent_1, global_latent_1], axis=-1))
    loss_aux_1 = seg_loss(global_label, pred_aux_1)

    loss_feat_1 = cos_regularization(local_latent_1, zoom)
    return loss_1, loss_aux_1, loss_feat_1, pred_1, pred_aux_1


# ----------------------------------------------------------------------------
# Deterministic parameter init
# ----------------------------------------------------------------------------
def init_params(key, cfg):
    C = cfg.model.embed_dim
    cls = cfg.train.cls_num
    keys = iter(jax.random.split(key, 128))

    def conv(kh, kw, cin, cout):
        fan = kh * kw * cin
        return {"w": jax.random.normal(next(keys), (kh, kw, cin, cout), jnp.float32)
                     * jnp.sqrt(2.0 / fan),
                "b": jnp.zeros((cout,), jnp.float32)}

    def gn(c):
        return {"g": jnp.ones((c,), jnp.float32), "b": jnp.zeros((c,), jnp.float32)}

    enc = []
    cin = 1
    for _ in range(cfg.model.depth):
        enc.append({"gn_in": gn(cin),
                    "down": conv(4, 4, cin, C),
                    "res": [{"gn": gn(C), "conv": conv(3, 3, C, C)} for _ in range(3)]})
        cin = C

    params = {"enc": enc}
    params["aspp"] = ([{"conv": conv(1, 1, 2 * C, C), "gn": gn(C)}]
                      + [{"conv": conv(3, 3, 2 * C, C), "gn": gn(C)} for _ in range(3)]
                      + [{"conv": conv(1, 1, 2 * C, C), "gn": gn(C)}])
    params["proj"] = {"conv": conv(1, 1, 5 * C, C), "gn": gn(C)}
    params["head"] = {"conv": conv(3, 3, C, C), "gn": gn(C)}
    params["cls"] = conv(1, 1, C, cls)
    return params


# ----------------------------------------------------------------------------
if __name__ == "__main__":
    cfg = SimpleNamespace(
        model=SimpleNamespace(depth=1, embed_dim=32),
        train=SimpleNamespace(cls_num=3, local_mae_patch=2, global_mae_patch=2),
        data=SimpleNamespace(patch_size=(16, 16)),
    )

    root = jax.random.PRNGKey(0)
    kp, k1, k2, k3, k4 = jax.random.split(root, 5)
    params = init_params(kp, cfg)

    # NHWC inputs (PyTorch equivalent: (1,1,16,16) NCHW); batch=1 (the module's
    # cos_regularization squeeze() implies batch size 1).
    local_patch = jax.random.normal(k1, (1, 16, 16, 1), jnp.float32)
    global_img = jax.random.normal(k2, (1, 16, 16, 1), jnp.float32)
    local_label = jax.random.randint(k3, (1, 16, 16), 0, cfg.train.cls_num)
    global_label = jax.random.randint(k4, (1, 16, 16), 0, cfg.train.cls_num)
    coordinates = (0, 2, 0, 2)   # slice of the 4x4 global latent

    outs = masked_seg_forward(params, cfg, coordinates, local_patch, local_label,
                              global_img, global_label,
                              mask_ratio=0, pseudo=False, real_label=True)
    outs = jax.block_until_ready(outs)
    loss_1, loss_aux_1, loss_feat_1, pred_1, pred_aux_1 = outs
    assert pred_1.shape == (1, 16, 16, cfg.train.cls_num)
    assert pred_aux_1.shape == (1, 16, 16, cfg.train.cls_num)
    assert all(jnp.isfinite(v).all() for v in (loss_1, loss_aux_1, loss_feat_1))
    print("KERNEL_OK")
</pallas_src>

<mosaic_0001>
module attributes {stable_mosaic.version = 11 : i64} {
  func.func @kernel(%arg0: i32, %arg1: memref<1x16x16xbf16, #tpu.memory_space<vmem>>, %arg2: memref<1x16xf32, #tpu.memory_space<vmem>>, %arg3: memref<1x16xf32, #tpu.memory_space<vmem>>, %arg4: memref<16x32xbf16, #tpu.memory_space<vmem>>, %arg5: memref<1x32xf32, #tpu.memory_space<vmem>>, %arg6: memref<1x16x32xbf16, #tpu.memory_space<vmem>>) attributes {dimension_semantics = [#tpu.dimension_semantics<parallel>], iteration_bounds = array<i64: 1>, scalar_prefetch = 0 : i64, scratch_operands = 0 : i64, tpu.core_type = #tpu.core_type<tc>, window_params = [{transform_indices = @transform_0, window_bounds = array<i64: 1, 16, 16>}, {pipeline_mode = #tpu.pipeline_mode<synchronous>, transform_indices = @transform_1, window_bounds = array<i64: 1, 16>}, {pipeline_mode = #tpu.pipeline_mode<synchronous>, transform_indices = @transform_2, window_bounds = array<i64: 1, 16>}, {pipeline_mode = #tpu.pipeline_mode<synchronous>, transform_indices = @transform_3, window_bounds = array<i64: 16, 32>}, {pipeline_mode = #tpu.pipeline_mode<synchronous>, transform_indices = @transform_4, window_bounds = array<i64: 1, 32>}, {transform_indices = @transform_5, window_bounds = array<i64: 1, 16, 32>}]} {
    %c0 = arith.constant 0 : index
    %c0_0 = arith.constant 0 : index
    %c0_1 = arith.constant 0 : index
    %0 = vector.load %arg1[%c0, %c0_0, %c0_1] : memref<1x16x16xbf16, #tpu.memory_space<vmem>>, vector<1x16x16xbf16>
    %1 = vector.shape_cast %0 : vector<1x16x16xbf16> to vector<16x16xbf16>
    %2 = arith.extf %1 : vector<16x16xbf16> to vector<16x16xf32>
    %3 = vector.shape_cast %2 : vector<16x16xf32> to vector<1x16x16xf32>
    %cst = arith.constant dense<0.000000e+00> : vector<1xf32>
    %4 = vector.multi_reduction <add>, %3, %cst [1, 2] : vector<1x16x16xf32> to vector<1xf32>
    %5 = vector.shape_cast %4 : vector<1xf32> to vector<1x1x1xf32>
    %6 = vector.extract %5[0, 0, 0] : f32 from vector<1x1x1xf32>
    %cst_2 = arith.constant 2.560000e+02 : f32
    %7 = arith.divf %6, %cst_2 : f32
    %8 = vector.broadcast %7 : f32 to vector<16x16xf32>
    %9 = arith.subf %2, %8 : vector<16x16xf32>
    %10 = arith.mulf %9, %9 : vector<16x16xf32>
    %11 = vector.shape_cast %10 : vector<16x16xf32> to vector<1x16x16xf32>
    %cst_3 = arith.constant dense<0.000000e+00> : vector<1xf32>
    %12 = vector.multi_reduction <add>, %11, %cst_3 [1, 2] : vector<1x16x16xf32> to vector<1xf32>
    %13 = vector.shape_cast %12 : vector<1xf32> to vector<1x1x1xf32>
    %14 = vector.extract %13[0, 0, 0] : f32 from vector<1x1x1xf32>
    %cst_4 = arith.constant 2.560000e+02 : f32
    %15 = arith.divf %14, %cst_4 : f32
    %cst_5 = arith.constant 9.99999974E-6 : f32
    %16 = arith.addf %15, %cst_5 : f32
    %17 = math.rsqrt %16 : f32
    %18 = vector.broadcast %17 : f32 to vector<16x16xf32>
    %19 = arith.mulf %9, %18 : vector<16x16xf32>
    %c0_6 = arith.constant 0 : index
    %c0_7 = arith.constant 0 : index
    %20 = vector.load %arg2[%c0_6, %c0_7] : memref<1x16xf32, #tpu.memory_space<vmem>>, vector<1x16xf32>
    %21 = vector.broadcast %20 : vector<1x16xf32> to vector<16x16xf32>
    %22 = arith.mulf %19, %21 : vector<16x16xf32>
    %c0_8 = arith.constant 0 : index
    %c0_9 = arith.constant 0 : index
    %23 = vector.load %arg3[%c0_8, %c0_9] : memref<1x16xf32, #tpu.memory_space<vmem>>, vector<1x16xf32>
    %24 = vector.broadcast %23 : vector<1x16xf32> to vector<16x16xf32>
    %25 = arith.addf %22, %24 : vector<16x16xf32>
    %26 = arith.truncf %25 : vector<16x16xf32> to vector<16x16xbf16>
    %c0_10 = arith.constant 0 : index
    %c0_11 = arith.constant 0 : index
    %27 = vector.load %arg4[%c0_10, %c0_11] : memref<16x32xbf16, #tpu.memory_space<vmem>>, vector<16x32xbf16>
    %cst_12 = arith.constant dense<0.000000e+00> : vector<16x32xf32>
    %28 = tpu.matmul %26, %27, %cst_12 {dimension_numbers = #tpu.dot_dimension_numbers<[1], [0], [0], [1], [0, 0, 1, 1], [], []>} : vector<16x16xbf16>, vector<16x32xbf16>, vector<16x32xf32> -> vector<16x32xf32>
    %c0_13 = arith.constant 0 : index
    %c0_14 = arith.constant 0 : index
    %29 = vector.load %arg5[%c0_13, %c0_14] : memref<1x32xf32, #tpu.memory_space<vmem>>, vector<1x32xf32>
    %30 = vector.broadcast %29 : vector<1x32xf32> to vector<16x32xf32>
    %31 = arith.addf %28, %30 : vector<16x32xf32>
    %cst_15 = arith.constant 0.000000e+00 : f32
    %32 = vector.broadcast %cst_15 : f32 to vector<16x32xf32>
    %33 = arith.maximumf %31, %32 : vector<16x32xf32>
    %34 = arith.truncf %33 : vector<16x32xf32> to vector<16x32xbf16>
    %c0_16 = arith.constant 0 : index
    %c0_17 = arith.constant 0 : index
    %c0_18 = arith.constant 0 : index
    %35 = vector.load %arg6[%c0_16, %c0_17, %c0_18] : memref<1x16x32xbf16, #tpu.memory_space<vmem>>, vector<1x16x32xbf16>
    %36 = vector.shape_cast %35 : vector<1x16x32xbf16> to vector<16x32xbf16>
    %37 = vector.shape_cast %34 : vector<16x32xbf16> to vector<1x16x32xbf16>
    tpu.vector_store %arg6[%c0_16, %c0_17, %c0_18], %37 {strides = array<i32>} : memref<1x16x32xbf16, #tpu.memory_space<vmem>>, vector<1x16x32xbf16>,
    return
  }
  func.func @transform_0(%arg0: i32) -> (i32, i32, i32) {
    %c0_i32 = arith.constant 0 : i32
    %c0_i32_0 = arith.constant 0 : i32
    %c0_i32_1 = arith.constant 0 : i32
    return %arg0, %c0_i32, %c0_i32_0 : i32, i32, i32
  }
  func.func @transform_1(%arg0: i32) -> (i32, i32) {
    %c0_i32 = arith.constant 0 : i32
    %c0_i32_0 = arith.constant 0 : i32
    %c0_i32_1 = arith.constant 0 : i32
    return %c0_i32, %c0_i32_0 : i32, i32
  }
  func.func @transform_2(%arg0: i32) -> (i32, i32) {
    %c0_i32 = arith.constant 0 : i32
    %c0_i32_0 = arith.constant 0 : i32
    %c0_i32_1 = arith.constant 0 : i32
    return %c0_i32, %c0_i32_0 : i32, i32
  }
  func.func @transform_3(%arg0: i32) -> (i32, i32) {
    %c0_i32 = arith.constant 0 : i32
    %c0_i32_0 = arith.constant 0 : i32
    %c0_i32_1 = arith.constant 0 : i32
    return %c0_i32, %c0_i32_0 : i32, i32
  }
  func.func @transform_4(%arg0: i32) -> (i32, i32) {
    %c0_i32 = arith.constant 0 : i32
    %c0_i32_0 = arith.constant 0 : i32
    %c0_i32_1 = arith.constant 0 : i32
    return %c0_i32, %c0_i32_0 : i32, i32
  }
  func.func @transform_5(%arg0: i32) -> (i32, i32, i32) {
    %c0_i32 = arith.constant 0 : i32
    %c0_i32_0 = arith.constant 0 : i32
    %c0_i32_1 = arith.constant 0 : i32
    return %arg0, %c0_i32, %c0_i32_0 : i32, i32, i32
  }
}

</mosaic_0001>

<llo_original>
// kernel: tpu_custom_call.1
$region0: #{tpu_custom_call.1}
  #allocation0 [shape = 'u32[]', space=smem, size = 0x4, offset = 0x4, fixed_abs, tag = 'smem constant byte address 0x4 - core index']
  #allocation1 [shape = 'u32[144,128]{1,0:T(1,128)}', space=vmem, size = 0x12000, scoped, tag = 'internal scratch']
  %s0 = inlined_call_operand.hbm [shape: bf16[1,16,16], index: 0, kind: input, shape index: {}]
  %s1 = inlined_call_operand.vmem [shape: f32[1,16], index: 1, kind: input, shape index: {}]
  %s2 = inlined_call_operand.vmem [shape: f32[1,16], index: 2, kind: input, shape index: {}]
  %s3 = inlined_call_operand.vmem [shape: bf16[16,32], index: 3, kind: input, shape index: {}]
  %s4 = inlined_call_operand.vmem [shape: f32[1,32], index: 4, kind: input, shape index: {}]
  %s5 = inlined_call_operand.hbm [shape: bf16[1,16,32], index: 5, kind: output, shape index: {}]
  %s6 = sld [smem:[#allocation0]]
  $region34: #{tpu_custom_call.1} parent=0
    _
  %s8 = ssub.s32 1, %s6
  %s9 = scalar_select 0, %s8, %s6
  $region1: #{tpu_custom_call.1} parent=0
    #allocation2 [shape = 'u8[4096]{0}', space=vmem, size = 0x1000, scoped, tag = 'input window, operand 0, single buffered']
    #allocation3 [shape = 's32[1]{0}', space=sflag, size = 0x4, scoped, tag = 'scoped memory for tpu_custom_call.1']
    #allocation4 [shape = 's32[1]{0}', space=sflag, size = 0x4, scoped, tag = 'scoped memory for tpu_custom_call.1']
    #allocation5 [shape = 'u8[4096]{0}', space=vmem, size = 0x1000, scoped, tag = 'output window, operand 0, single buffered']
    %10 = vsyncpa [#allocation3], 0
    %11 = vsyncpa [#allocation4], 0
    // Predicated region
    $region2: #{tpu_custom_call.1} parent=1 // pred_check
      _
    $region3: #{tpu_custom_call.1} parent=1 // pred_check_branch
      %13 = sbr.rel (0) target = $region5
    $region4: #{tpu_custom_call.1} parent=1 // pred_region
      %s15 = ssub.s32 128, 128
      %16 = vsyncadd [#allocation3], %s15
      %s17 = sshll.u32 [#allocation2], 4
      %s18 = int_to_ptr.vmem [resolvable:$true] %s17
      %23 = dma.hbm_to_vmem [thread:$0]  %s0, 128, %s18, [#allocation3], 64, 64, 4
    $region5: #{tpu_custom_call.1} parent=1 // pred_fallthru
      _
    // Predicated region
    $region6: #{tpu_custom_call.1} parent=1 // pred_check
      _
    $region7: #{tpu_custom_call.1} parent=1 // pred_check_branch
      %25 = sbr.rel (0) target = $region9
    $region8: #{tpu_custom_call.1} parent=1 // pred_region
      _
    $region9: #{tpu_custom_call.1} parent=1 // pred_fallthru
      _
    // Predicated region
    $region10: #{tpu_custom_call.1} parent=1 // pred_check
      _
    $region11: #{tpu_custom_call.1} parent=1 // pred_check_branch
      %27 = sbr.rel (0) target = $region13
    $region12: #{tpu_custom_call.1} parent=1 // pred_region
      _
    $region13: #{tpu_custom_call.1} parent=1 // pred_fallthru
      _
    // Predicated region
    $region14: #{tpu_custom_call.1} parent=1 // pred_check
      _
    $region15: #{tpu_custom_call.1} parent=1 // pred_check_branch
      %29 = sbr.rel (0) target = $region17
    $region16: #{tpu_custom_call.1} parent=1 // pred_region
      _
    $region17: #{tpu_custom_call.1} parent=1 // pred_fallthru
      _
    // Predicated region
    $region18: #{tpu_custom_call.1} parent=1 // pred_check
      _
    $region19: #{tpu_custom_call.1} parent=1 // pred_check_branch
      %31 = sbr.rel (0) target = $region21
    $region20: #{tpu_custom_call.1} parent=1 // pred_region
      _
    $region21: #{tpu_custom_call.1} parent=1 // pred_fallthru
      _
    // Predicated region
    $region22: #{tpu_custom_call.1} parent=1 // pred_check
      _
    $region23: #{tpu_custom_call.1} parent=1 // pred_check_branch
      %33 = sbr.rel (0) target = $region25
    $region24: #{tpu_custom_call.1} parent=1 // pred_region
      %34 = dma.done [#allocation3], 128
    $region25: #{tpu_custom_call.1} parent=1 // pred_fallthru
      _
    %v36 = vld [vmem:[#allocation2] sm:$0xf]
    %v37 = vld [vmem:[#allocation2 + $0x4] sm:$0xf]
    %v38 = vunpack.c.l.bf16 %v36
    %v39 = vunpack.c.l.bf16 %v37
    %vm40 = vcmask 130048
    %v41 = vsel %vm40, %v38, 0.0
    %v42 = vsel %vm40, %v39, 0.0
    %v43 = vadd.f32 %v41, %v42
    %44 = vadd.xlane.f32.xlu0 %v43
    %v45 = vpop.xlane.xlu0 %44
    %v46 = vrot.slane %v45, 4
    %v47 = vadd.f32 %v45, %v46
    %v48 = vrot.slane %v47, 2
    %v49 = vadd.f32 %v47, %v48
    %v50 = vrot.slane %v49, 1
    %v51 = vadd.f32 %v49, %v50
    %s52 = vtos %v51
    %v53 = vrcp.pop 256.0
    %s54 = vtos %v53
    %s55 = smul.f32 %s52, %s54
    %v56 = vstv %s55
    %v57 = vsub.f32 %v38, %v56
    %v58 = vsub.f32 %v39, %v56
    %v59 = vmul.f32 %v57, %v57
    %v60 = vmul.f32 %v58, %v58
    %v61 = vsel %vm40, %v59, 0.0
    %v62 = vsel %vm40, %v60, 0.0
    %v63 = vadd.f32 %v61, %v62
    %64 = vadd.xlane.f32.xlu0 %v63
    %v65 = vpop.xlane.xlu0 %64
    %v66 = vrot.slane %v65, 4
    %v67 = vadd.f32 %v65, %v66
    %v68 = vrot.slane %v67, 2
    %v69 = vadd.f32 %v67, %v68
    %v70 = vrot.slane %v69, 1
    %v71 = vadd.f32 %v69, %v70
    %s72 = vtos %v71
    %v73 = vrcp.pop 256.0
    %s74 = vtos %v73
    %s75 = smul.f32 %s72, %s74
    %s76 = sadd.f32 %s75, 1e-05
    %v77 = vstv %s76
    %v78 = vrsqrt.pop %v77
    %s79 = vtos %v78
    %v80 = vstv %s79
    %v81 = vmul.f32 %v57, %v80
    %v82 = vmul.f32 %v58, %v80
    %v83 = vld [vmem:[%s1] sm:$0x1]
    %v85 = vlaneseq
    %v86 = vshrl.u32 %v85, 7
    %v87 = vsub.s32 0, %v86
    %v88 = vrot.slane %v83, %v87
    %v90 = vmul.f32 %v81, %v88
    %v91 = vmul.f32 %v82, %v88
    %v92 = vld [vmem:[%s2] sm:$0x1]
    %v94 = vlaneseq
    %v95 = vshrl.u32 %v94, 7
    %v96 = vsub.s32 0, %v95
    %v97 = vrot.slane %v92, %v96
    %v99 = vadd.f32 %v90, %v97
    %v100 = vadd.f32 %v91, %v97
    %v101 = vpack.c.bf16 %v100, %v99
    %v102 = vld [vmem:[%s3] sm:$0xf]
    %v103 = vld [vmem:[%s3 + $0x4] sm:$0xf]
    %v104 = vld [vmem:[%s4] sm:$0x1]
    %v106 = vlaneseq
    %v107 = vshrl.u32 %v106, 7
    %v108 = vsub.s32 0, %v107
    %v109 = vrot.slane %v104, %v108
    %v113 = vunpack.c.l.b16 %v102
    %v114 = vunpack.c.l.b16 %v103
    %v115 = vpack.c.b16 %v114, %v113
    %v118 = vsel %vm40, %v101, 0
    %120 = vmatprep.subr.bf16.mxu0 0
    %121 = vmatpush1.bf16.msra.mxu0 %v115
    %122 = vmatprep.subr.bf16.mxu0 0
    %123 = vmatpush1.bf16.msra.mxu0 0
    %124 = vmatprep.subr.bf16.mxu0 0
    %125 = vmatpush1.bf16.msra.mxu0 0
    %126 = vmatprep.subr.bf16.mxu0 0
    %127 = vmatpush1.bf16.msra.mxu0 0
    %128 = vmatprep.subr.bf16.mxu0 0
    %129 = vmatpush1.bf16.msra.mxu0 0
    %130 = vmatprep.subr.bf16.mxu0 0
    %131 = vmatpush1.bf16.msra.mxu0 0
    %132 = vmatprep.subr.bf16.mxu0 0
    %133 = vmatpush1.bf16.msra.mxu0 0
    %134 = vmatprep.subr.bf16.mxu0 0
    %135 = vmatpush1.bf16.msra.mxu0 0
    %136 = vmatprep.subr.bf16.mxu0 0
    %137 = vmatpush1.bf16.msra.mxu0 0
    %138 = vmatprep.subr.bf16.mxu0 0
    %139 = vmatpush1.bf16.msra.mxu0 0
    %140 = vmatprep.subr.bf16.mxu0 0
    %141 = vmatpush1.bf16.msra.mxu0 0
    %142 = vmatprep.subr.bf16.mxu0 0
    %143 = vmatpush1.bf16.msra.mxu0 0
    %144 = vmatprep.subr.bf16.mxu0 0
    %145 = vmatpush1.bf16.msra.mxu0 0
    %146 = vmatprep.subr.bf16.mxu0 0
    %147 = vmatpush1.bf16.msra.mxu0 0
    %148 = vmatprep.subr.bf16.mxu0 0
    %149 = vmatpush1.bf16.msra.mxu0 0
    %150 = vmatprep.subr.bf16.mxu0 0
    %151 = vmatpush1.bf16.msra.mxu0 0
    %152 = vmatprep.mubr.bf16.mxu0 0
    %153 = vmatmul.mubr.bf16.gmra.mrb[0].mxu0 %v118
    %v154 = vpop.f32.mrb[0].mxu0
    %v155 = vadd.f32 %v109, %v154
    %v156 = vpop.f32.mrb[0].mxu0
    %v157 = vpop.f32.mrb[0].mxu0
    %v158 = vadd.f32 %v109, %v157
    %v159 = vpop.f32.mrb[0].mxu0
    %160 = vdwg.mxu0
    %v161 = vmax.f32 %v155, 0.0
    %v162 = vmax.f32 %v158, 0.0
    %v163 = vpack.c.bf16 %v162, %v161
    %v165 = vunpack.c.l.b16 %v163
    %v166 = vunpack.c.h.b16 %v163
    %v167 = vpack.c.b16 %v165, %v165
    %v168 = vpack.c.b16 %v166, %v166
    %vm171 = vcmask 257024
    %172 = vst.msk [vmem:[#allocation5] sm:$0xf] %vm171, %v167
    %173 = vst.msk [vmem:[#allocation5 + $0x4] sm:$0xf] %vm171, %v168
    // Predicated region
    $region26: #{tpu_custom_call.1} parent=1 // pred_check
      _
    $region27: #{tpu_custom_call.1} parent=1 // pred_check_branch
      %175 = sbr.rel (0) target = $region29
    $region28: #{tpu_custom_call.1} parent=1 // pred_region
      %s177 = ssub.s32 128, 128
      %178 = vsyncadd [#allocation4], %s177
      %s179 = sshll.u32 [#allocation5], 4
      %s180 = int_to_ptr.vmem [resolvable:$true] %s179
      %185 = dma.vmem_to_hbm [thread:$0]  %s180, 128, %s5, [#allocation4], 64, 64, 4
    $region29: #{tpu_custom_call.1} parent=1 // pred_fallthru
      _
    // Predicated region
    $region30: #{tpu_custom_call.1} parent=1 // pred_check
      _
    $region31: #{tpu_custom_call.1} parent=1 // pred_check_branch
      %187 = sbr.rel (0) target = $region33
    $region32: #{tpu_custom_call.1} parent=1 // pred_region
      %188 = dma.done [#allocation4], 128
    $region33: #{tpu_custom_call.1} parent=1 // pred_fallthru
      _
    %189 = vsyncpa [#allocation3], 1
    %190 = vsyncpa [#allocation4], 1

</llo_original>
